<compile_context>
chip_gen: v7x
topology: tpu7x:2x2x1
jax: 0.10.0
libtpu: 0.0.40
codegen_flags: <defaults>
</compile_context>

<pallas_src>
import functools

import jax
import jax.numpy as jnp
from jax.experimental import pallas as pl
from jax.experimental.pallas import tpu as pltpu

LANES = 128
SUBLANES = 8
MAX_BLOCK_ROWS = 8192                    # 8192x128 f32 tile = 4 MiB per input
VMEM_LIMIT_BYTES = 32 * 1024 * 1024      # covers 2 inputs x 2 bufs x 4 MiB + slack


def _sqr_hinge_kernel(pred_ref, targ_ref, acc_ref, *, block_rows, valid_rows):
    """Accumulates sum(relu(1 - p*t)^2) of this tile into the (8,128) output."""
    j = pl.program_id(0)
    last = pl.num_programs(0) - 1

    @pl.when(j == 0)
    def _init():
        acc_ref[...] = jnp.zeros_like(acc_ref)

    p = pred_ref[...].astype(jnp.float32)
    t = targ_ref[...].astype(jnp.float32)
    h = jnp.maximum(1.0 - p * t, 0.0)
    hh = h * h

    # Steady-state blocks: unmasked in-tile partial reduce (pure VALU adds).
    @pl.when(j < last)
    def _steady():
        acc_ref[...] += hh.reshape(-1, SUBLANES, LANES).sum(axis=0)

    # Last block: mask any rows past the end of the (row-padded) input that
    # came from the overhanging block window, then accumulate.
    @pl.when(j == last)
    def _ragged():
        row_ids = jax.lax.broadcasted_iota(jnp.int32, (block_rows, LANES), 0)
        global_row = j * block_rows + row_ids
        hh_m = jnp.where(global_row < valid_rows, hh, 0.0)
        acc_ref[...] += hh_m.reshape(-1, SUBLANES, LANES).sum(axis=0)


def sqr_hinge_loss(pred, target, *, max_block_rows=MAX_BLOCK_ROWS):
    """Computes mean(relu(1 - pred*target)^2) over all elements."""
    assert pred.shape == target.shape
    numel = pred.size

    # Keep native dtype in HBM; the kernel casts tiles to f32 after load.
    p_flat = jnp.ravel(pred)
    t_flat = jnp.ravel(target)

    # Pad to a multiple of 8*128 with pred = target = 1.0 (hinge term == 0),
    # so every block is lane-dense and sublane-aligned.  Tiny (<1023 elems).
    chunk = SUBLANES * LANES
    rem = numel % chunk
    if rem:
        pad = chunk - rem
        p_flat = jnp.pad(p_flat, (0, pad), constant_values=1.0)
        t_flat = jnp.pad(t_flat, (0, pad), constant_values=1.0)

    rows = p_flat.size // LANES             # multiple of 8
    p2d = p_flat.reshape(rows, LANES)
    t2d = t_flat.reshape(rows, LANES)

    # Biggest tile that fits the VMEM budget; full-array block for small inputs.
    block_rows = rows if rows <= max_block_rows else max_block_rows
    n_blocks = pl.cdiv(rows, block_rows)

    bytes_accessed = (p2d.size * p2d.dtype.itemsize
                      + t2d.size * t2d.dtype.itemsize
                      + SUBLANES * LANES * 4)
    cost = pl.CostEstimate(flops=4 * numel, transcendentals=0,
                           bytes_accessed=bytes_accessed)

    partial = pl.pallas_call(
        functools.partial(_sqr_hinge_kernel, block_rows=block_rows,
                          valid_rows=rows),
        out_shape=jax.ShapeDtypeStruct((SUBLANES, LANES), jnp.float32),
        grid_spec=pltpu.PrefetchScalarGridSpec(
            num_scalar_prefetch=0,
            grid=(n_blocks,),
            in_specs=[
                pl.BlockSpec((block_rows, LANES), lambda j: (j, 0)),
                pl.BlockSpec((block_rows, LANES), lambda j: (j, 0)),
            ],
            # Same block index every step -> accumulator stays resident in
            # VMEM and is written back to HBM exactly once.
            out_specs=pl.BlockSpec((SUBLANES, LANES), lambda j: (0, 0)),
        ),
        compiler_params=pltpu.CompilerParams(
            dimension_semantics=("arbitrary",),
            vmem_limit_bytes=VMEM_LIMIT_BYTES,
        ),
        cost_estimate=cost,
    )(p2d, t2d)

    return jnp.sum(partial) / jnp.float32(numel)


def _reference(pred, target):
    h = jnp.maximum(1.0 - pred.astype(jnp.float32) * target.astype(jnp.float32), 0.0)
    return jnp.mean(h * h)


if __name__ == "__main__":
    key = jax.random.PRNGKey(0)
    k1, k2, k3, k4, k5, k6 = jax.random.split(key, 6)

    # NCHW-style predictions and +/-1 targets, small shapes.
    x = jax.random.normal(k1, (2, 4, 16, 16), dtype=jnp.float32)
    t = jnp.sign(jax.random.normal(k2, (2, 4, 16, 16), dtype=jnp.float32))
    t = jnp.where(t == 0, 1.0, t)

    loss = jax.block_until_ready(sqr_hinge_loss(x, t))
    ref = jax.block_until_ready(_reference(x, t))
    assert loss.shape == ()
    assert jnp.allclose(loss, ref, rtol=1e-5, atol=1e-6), (loss, ref)

    # Ragged element count: exercises the 1.0-pad + alignment path.
    x2 = jax.random.normal(k3, (2, 3, 15, 16), dtype=jnp.float32)
    t2 = jnp.sign(jax.random.normal(k4, (2, 3, 15, 16), dtype=jnp.float32))
    t2 = jnp.where(t2 == 0, 1.0, t2)
    loss2 = jax.block_until_ready(sqr_hinge_loss(x2, t2))
    ref2 = jax.block_until_ready(_reference(x2, t2))
    assert jnp.allclose(loss2, ref2, rtol=1e-5, atol=1e-6), (loss2, ref2)

    # Forced small tiles: multi-step grid, accumulation across steps.
    loss3 = jax.block_until_ready(sqr_hinge_loss(x, t, max_block_rows=8))
    assert jnp.allclose(loss3, ref, rtol=1e-5, atol=1e-6), (loss3, ref)

    # Overhanging last block (rows=24, block_rows=16): exercises the gated
    # in-kernel row mask on the final grid step.
    x4 = jax.random.normal(k5, (2, 4, 16, 24), dtype=jnp.float32)
    t4 = jnp.sign(jax.random.normal(k6, (2, 4, 16, 24), dtype=jnp.float32))
    t4 = jnp.where(t4 == 0, 1.0, t4)
    loss4 = jax.block_until_ready(sqr_hinge_loss(x4, t4, max_block_rows=16))
    ref4 = jax.block_until_ready(_reference(x4, t4))
    assert jnp.allclose(loss4, ref4, rtol=1e-5, atol=1e-6), (loss4, ref4)

    print("KERNEL_OK")
</pallas_src>

<mosaic_0001>
module attributes {stable_mosaic.version = 11 : i64} {
  func.func @_sqr_hinge_kernel(%arg0: i32, %arg1: memref<16x128xf32, #tpu.memory_space<vmem>>, %arg2: memref<16x128xf32, #tpu.memory_space<vmem>>, %arg3: memref<8x128xf32, #tpu.memory_space<vmem>>) attributes {dimension_semantics = [#tpu.dimension_semantics<arbitrary>], iteration_bounds = array<i64: 1>, scalar_prefetch = 0 : i64, scratch_operands = 0 : i64, tpu.core_type = #tpu.core_type<tc>, window_params = [{transform_indices = @transform_0, window_bounds = array<i64: 16, 128>}, {transform_indices = @transform_1, window_bounds = array<i64: 16, 128>}, {pipeline_mode = #tpu.pipeline_mode<synchronous>, transform_indices = @transform_2, window_bounds = array<i64: 8, 128>}]} {
    %c0_i32 = arith.constant 0 : i32
    %0 = arith.cmpi eq, %arg0, %c0_i32 : i32
    %1 = arith.extui %0 : i1 to i32
    %c0_i32_0 = arith.constant 0 : i32
    %2 = arith.cmpi ne, %1, %c0_i32_0 : i32
    scf.if %2 {
      %cst_9 = arith.constant 0.000000e+00 : f32
      %17 = vector.broadcast %cst_9 : f32 to vector<8x128xf32>
      %c0_10 = arith.constant 0 : index
      %c0_11 = arith.constant 0 : index
      %18 = vector.load %arg3[%c0_10, %c0_11] : memref<8x128xf32, #tpu.memory_space<vmem>>, vector<8x128xf32>
      tpu.vector_store %arg3[%c0_10, %c0_11], %17 {strides = array<i32>} : memref<8x128xf32, #tpu.memory_space<vmem>>, vector<8x128xf32>,
    } else {
    }
    %c0 = arith.constant 0 : index
    %c0_1 = arith.constant 0 : index
    %3 = vector.load %arg1[%c0, %c0_1] : memref<16x128xf32, #tpu.memory_space<vmem>>, vector<16x128xf32>
    %c0_2 = arith.constant 0 : index
    %c0_3 = arith.constant 0 : index
    %4 = vector.load %arg2[%c0_2, %c0_3] : memref<16x128xf32, #tpu.memory_space<vmem>>, vector<16x128xf32>
    %5 = arith.mulf %3, %4 : vector<16x128xf32>
    %cst = arith.constant 1.000000e+00 : f32
    %6 = vector.broadcast %cst : f32 to vector<16x128xf32>
    %7 = arith.subf %6, %5 : vector<16x128xf32>
    %cst_4 = arith.constant 0.000000e+00 : f32
    %8 = vector.broadcast %cst_4 : f32 to vector<16x128xf32>
    %9 = arith.maximumf %7, %8 : vector<16x128xf32>
    %10 = arith.mulf %9, %9 : vector<16x128xf32>
    %c0_i32_5 = arith.constant 0 : i32
    %11 = arith.cmpi slt, %arg0, %c0_i32_5 : i32
    %12 = arith.extui %11 : i1 to i32
    %c0_i32_6 = arith.constant 0 : i32
    %13 = arith.cmpi ne, %12, %c0_i32_6 : i32
    scf.if %13 {
      %c0_9 = arith.constant 0 : index
      %c0_10 = arith.constant 0 : index
      %17 = vector.load %arg3[%c0_9, %c0_10] : memref<8x128xf32, #tpu.memory_space<vmem>>, vector<8x128xf32>
      %18 = vector.shape_cast %10 : vector<16x128xf32> to vector<2x8x128xf32>
      %cst_11 = arith.constant dense<0.000000e+00> : vector<8x128xf32>
      %19 = vector.multi_reduction <add>, %18, %cst_11 [0] : vector<2x8x128xf32> to vector<8x128xf32>
      %20 = arith.addf %17, %19 : vector<8x128xf32>
      %c0_12 = arith.constant 0 : index
      %c0_13 = arith.constant 0 : index
      %21 = vector.load %arg3[%c0_12, %c0_13] : memref<8x128xf32, #tpu.memory_space<vmem>>, vector<8x128xf32>
      tpu.vector_store %arg3[%c0_12, %c0_13], %20 {strides = array<i32>} : memref<8x128xf32, #tpu.memory_space<vmem>>, vector<8x128xf32>,
    } else {
    }
    %c0_i32_7 = arith.constant 0 : i32
    %14 = arith.cmpi eq, %arg0, %c0_i32_7 : i32
    %15 = arith.extui %14 : i1 to i32
    %c0_i32_8 = arith.constant 0 : i32
    %16 = arith.cmpi ne, %15, %c0_i32_8 : i32
    scf.if %16 {
      %17 = tpu.iota {dimensions = array<i32: 0>} : vector<16x128xi32>
      %c16_i32 = arith.constant 16 : i32
      %18 = arith.muli %arg0, %c16_i32 : i32
      %19 = vector.broadcast %18 : i32 to vector<16x128xi32>
      %20 = arith.addi %19, %17 : vector<16x128xi32>
      %c16_i32_9 = arith.constant 16 : i32
      %21 = vector.broadcast %c16_i32_9 : i32 to vector<16x128xi32>
      %22 = arith.cmpi slt, %20, %21 : vector<16x128xi32>
      %cst_10 = arith.constant 0.000000e+00 : f32
      %23 = vector.broadcast %cst_10 : f32 to vector<16x128xf32>
      %24 = arith.select %22, %10, %23 : vector<16x128xi1>, vector<16x128xf32>
      %c0_11 = arith.constant 0 : index
      %c0_12 = arith.constant 0 : index
      %25 = vector.load %arg3[%c0_11, %c0_12] : memref<8x128xf32, #tpu.memory_space<vmem>>, vector<8x128xf32>
      %26 = vector.shape_cast %24 : vector<16x128xf32> to vector<2x8x128xf32>
      %cst_13 = arith.constant dense<0.000000e+00> : vector<8x128xf32>
      %27 = vector.multi_reduction <add>, %26, %cst_13 [0] : vector<2x8x128xf32> to vector<8x128xf32>
      %28 = arith.addf %25, %27 : vector<8x128xf32>
      %c0_14 = arith.constant 0 : index
      %c0_15 = arith.constant 0 : index
      %29 = vector.load %arg3[%c0_14, %c0_15] : memref<8x128xf32, #tpu.memory_space<vmem>>, vector<8x128xf32>
      tpu.vector_store %arg3[%c0_14, %c0_15], %28 {strides = array<i32>} : memref<8x128xf32, #tpu.memory_space<vmem>>, vector<8x128xf32>,
    } else {
    }
    return
  }
  func.func @transform_0(%arg0: i32) -> (i32, i32) {
    %c0_i32 = arith.constant 0 : i32
    %c0_i32_0 = arith.constant 0 : i32
    return %arg0, %c0_i32 : i32, i32
  }
  func.func @transform_1(%arg0: i32) -> (i32, i32) {
    %c0_i32 = arith.constant 0 : i32
    %c0_i32_0 = arith.constant 0 : i32
    return %arg0, %c0_i32 : i32, i32
  }
  func.func @transform_2(%arg0: i32) -> (i32, i32) {
    %c0_i32 = arith.constant 0 : i32
    %c0_i32_0 = arith.constant 0 : i32
    %c0_i32_1 = arith.constant 0 : i32
    return %c0_i32, %c0_i32_0 : i32, i32
  }
}

</mosaic_0001>

<llo_original>
// kernel: tpu_custom_call.1
$region0: #{tpu_custom_call.1}
  #allocation0 [shape = 'u32[]', space=smem, size = 0x4, offset = 0x4, fixed_abs, tag = 'smem constant byte address 0x4 - core index']
  #allocation1 [shape = 'u32[144,128]{1,0:T(1,128)}', space=vmem, size = 0x12000, scoped, tag = 'internal scratch']
  %s0 = inlined_call_operand.hbm [shape: f32[16,128], index: 0, kind: input, shape index: {}]
  %s1 = inlined_call_operand.hbm [shape: f32[16,128], index: 1, kind: input, shape index: {}]
  %s2 = inlined_call_operand.hbm [shape: f32[8,128], index: 2, kind: output, shape index: {}]
  %s3 = sld [smem:[#allocation0]]
  $region38: #{tpu_custom_call.1} parent=0
    _
  %s5 = ssub.s32 1, %s3
  %s6 = scalar_select 0, %s5, %s3
  $region1: #{tpu_custom_call.1} parent=0
    #allocation2 [shape = 'u8[8192]{0}', space=vmem, size = 0x2000, scoped, tag = 'input window, operand 0, single buffered']
    #allocation3 [shape = 's32[1]{0}', space=sflag, size = 0x4, scoped, tag = 'scoped memory for tpu_custom_call.1']
    #allocation4 [shape = 's32[1]{0}', space=sflag, size = 0x4, scoped, tag = 'scoped memory for tpu_custom_call.1']
    #allocation5 [shape = 'u8[8192]{0}', space=vmem, size = 0x2000, scoped, tag = 'input window, operand 1, single buffered']
    #allocation6 [shape = 's32[1]{0}', space=sflag, size = 0x4, scoped, tag = 'scoped memory for tpu_custom_call.1']
    #allocation7 [shape = 'u8[4096]{0}', space=vmem, size = 0x1000, scoped, tag = 'output window, operand 0, single buffered']
    %7 = vsyncpa [#allocation3], 0
    %8 = vsyncpa [#allocation6], 0
    %9 = vsyncpa [#allocation4], 0
    // Predicated region
    $region2: #{tpu_custom_call.1} parent=1 // pred_check
      _
    $region3: #{tpu_custom_call.1} parent=1 // pred_check_branch
      %11 = sbr.rel (0) target = $region5
    $region4: #{tpu_custom_call.1} parent=1 // pred_region
      %s13 = ssub.s32 256, 256
      %14 = vsyncadd [#allocation3], %s13
      %s15 = sshll.u32 [#allocation2], 4
      %s16 = int_to_ptr.vmem [resolvable:$true] %s15
      %21 = dma.hbm_to_vmem [thread:$0]  %s0, 256, %s16, [#allocation3], 128, 128, 8
    $region5: #{tpu_custom_call.1} parent=1 // pred_fallthru
      _
    // Predicated region
    $region6: #{tpu_custom_call.1} parent=1 // pred_check
      _
    $region7: #{tpu_custom_call.1} parent=1 // pred_check_branch
      %23 = sbr.rel (0) target = $region9
    $region8: #{tpu_custom_call.1} parent=1 // pred_region
      %s25 = ssub.s32 256, 256
      %26 = vsyncadd [#allocation6], %s25
      %s27 = sshll.u32 [#allocation5], 4
      %s28 = int_to_ptr.vmem [resolvable:$true] %s27
      %33 = dma.hbm_to_vmem [thread:$0]  %s1, 256, %s28, [#allocation6], 128, 128, 8
    $region9: #{tpu_custom_call.1} parent=1 // pred_fallthru
      _
    // Predicated region
    $region10: #{tpu_custom_call.1} parent=1 // pred_check
      _
    $region11: #{tpu_custom_call.1} parent=1 // pred_check_branch
      %35 = sbr.rel (0) target = $region13
    $region12: #{tpu_custom_call.1} parent=1 // pred_region
      %36 = dma.done [#allocation3], 256
    $region13: #{tpu_custom_call.1} parent=1 // pred_fallthru
      _
    // Predicated region
    $region14: #{tpu_custom_call.1} parent=1 // pred_check
      _
    $region15: #{tpu_custom_call.1} parent=1 // pred_check_branch
      %38 = sbr.rel (0) target = $region17
    $region16: #{tpu_custom_call.1} parent=1 // pred_region
      %39 = dma.done [#allocation6], 256
    $region17: #{tpu_custom_call.1} parent=1 // pred_fallthru
      _
    %p40 = scmp.eq.s32.totalorder 0, 0
    // Predicated region
    $region18: #{tpu_custom_call.1} parent=1 // pred_check
      %p41 = pneg %p40
    $region19: #{tpu_custom_call.1} parent=1 // pred_check_branch
      %43 = sbr.rel (%p41) target = $region21
    $region20: #{tpu_custom_call.1} parent=1 // pred_region
      %44 = vst [vmem:[#allocation7] sm:$0xff] 0.0
    $region21: #{tpu_custom_call.1} parent=1 // pred_fallthru
      _
    %v45 = vld [vmem:[#allocation2] sm:$0xff]
    %v46 = vld [vmem:[#allocation2 + $0x8] sm:$0xff]
    %v47 = vld [vmem:[#allocation5] sm:$0xff]
    %v48 = vld [vmem:[#allocation5 + $0x8] sm:$0xff]
    %v49 = vmul.f32 %v45, %v47
    %v50 = vmul.f32 %v46, %v48
    %v51 = vsub.f32 1.0, %v49
    %v52 = vsub.f32 1.0, %v50
    %v53 = vmax.f32 %v51, 0.0
    %v54 = vmax.f32 %v52, 0.0
    %v55 = vmul.f32 %v53, %v53
    %v56 = vmul.f32 %v54, %v54
    %p57 = scmp.lt.s32.totalorder 0, 0
    // Predicated region
    $region22: #{tpu_custom_call.1} parent=1 // pred_check
      %p58 = pneg %p57
    $region23: #{tpu_custom_call.1} parent=1 // pred_check_branch
      %60 = sbr.rel (%p58) target = $region25
    $region24: #{tpu_custom_call.1} parent=1 // pred_region
      %v61 = vld [vmem:[#allocation7] sm:$0xff]
      %v62 = vadd.f32 %v55, %v56
      %v63 = vadd.f32 %v61, %v62
      %64 = vst [vmem:[#allocation7] sm:$0xff] %v63
    $region25: #{tpu_custom_call.1} parent=1 // pred_fallthru
      _
    // Predicated region
    $region26: #{tpu_custom_call.1} parent=1 // pred_check
      %p65 = pneg %p40
    $region27: #{tpu_custom_call.1} parent=1 // pred_check_branch
      %67 = sbr.rel (%p65) target = $region29
    $region28: #{tpu_custom_call.1} parent=1 // pred_region
      %v68 = vlaneseq
      %v69 = vshrl.u32 %v68, 7
      %v70 = vadd.s32 %v69, 8
      %s71 = smul.u32 0, 16
      %v72 = vstv %s71
      %v73 = vadd.s32 %v72, %v69
      %v74 = vadd.s32 %v72, %v70
      %vm75 = vcmp.lt.s32.totalorder %v73, 16
      %vm76 = vcmp.lt.s32.totalorder %v74, 16
      %v77 = vsel %vm75, %v55, 0.0
      %v78 = vsel %vm76, %v56, 0.0
      %v79 = vld [vmem:[#allocation7] sm:$0xff]
      %v80 = vadd.f32 %v77, %v78
      %v81 = vadd.f32 %v79, %v80
      %82 = vst [vmem:[#allocation7] sm:$0xff] %v81
    $region29: #{tpu_custom_call.1} parent=1 // pred_fallthru
      _
    // Predicated region
    $region30: #{tpu_custom_call.1} parent=1 // pred_check
      _
    $region31: #{tpu_custom_call.1} parent=1 // pred_check_branch
      %84 = sbr.rel (0) target = $region33
    $region32: #{tpu_custom_call.1} parent=1 // pred_region
      %s86 = ssub.s32 128, 128
      %87 = vsyncadd [#allocation4], %s86
      %s89 = sshll.u32 [#allocation7], 4
      %s90 = int_to_ptr.vmem [resolvable:$true] %s89
      %92 = dma.vmem_to_hbm [thread:$0]  %s90, 128, %s2, [#allocation4]
    $region33: #{tpu_custom_call.1} parent=1 // pred_fallthru
      _
    // Predicated region
    $region34: #{tpu_custom_call.1} parent=1 // pred_check
      _
    $region35: #{tpu_custom_call.1} parent=1 // pred_check_branch
      %94 = sbr.rel (0) target = $region37
    $region36: #{tpu_custom_call.1} parent=1 // pred_region
      %95 = dma.done [#allocation4], 128
    $region37: #{tpu_custom_call.1} parent=1 // pred_fallthru
      _
    %96 = vsyncpa [#allocation3], 1
    %97 = vsyncpa [#allocation6], 1
    %98 = vsyncpa [#allocation4], 1

</llo_original>
